<compile_context>
chip_gen: v7x
topology: tpu7x:2x2x1
jax: 0.10.0
libtpu: 0.0.40
codegen_flags: <defaults>
</compile_context>

<pallas_src>
import jax
import jax.numpy as jnp
from jax import lax
from jax.experimental import pallas as pl
from jax.experimental.pallas import tpu as pltpu


def _round_up(x, m):
    return pl.cdiv(x, m) * m


def transducer_decoder_kernel(emb_ref, mask_ref, wih_ref, whh_ref, bh_ref,
                              wout_ref, bout_ref, out_ref, hid_ref,
                              h_scr, prex_scr, hs_scr):
    """One (batch_block, time_chunk) grid step.

    emb_ref : (Tc, Bblk, Hp)  bf16 embedded targets (time-major chunk)
    mask_ref: (Tc, Bblk, 1)   f32 validity mask (t < length)
    wih_ref : (Hp, Hp) bf16   input->hidden
    whh_ref : (Hp, Hp) bf16   hidden->hidden
    bh_ref  : (1, Hp)  f32    hidden bias
    wout_ref: (Hp, Dp) bf16   output projection
    bout_ref: (1, Dp)  f32    output bias
    out_ref : (Tc, Bblk, Dp) f32
    hid_ref : (Tc, Bblk, Hp) f32
    h_scr   : (Bblk, Hp)     f32  recurrent state carried across time chunks
    prex_scr: (Tc*Bblk, Hp)  f32  hoisted input projection for the chunk
    hs_scr  : (Tc*Bblk, Hp)  f32  per-step hidden states for the chunk
    """
    Tc, Bblk, Hp = emb_ref.shape
    Dp = out_ref.shape[-1]

    # Reset carried hidden state at the start of each batch block's time sweep.
    @pl.when(pl.program_id(1) == 0)
    def _init():
        h_scr[...] = jnp.zeros(h_scr.shape, h_scr.dtype)

    # (1) Hoisted input projection: one big MXU matmul for the whole chunk.
    x2 = emb_ref[...].reshape(Tc * Bblk, Hp)
    prex_scr[...] = (jnp.dot(x2, wih_ref[...],
                             preferred_element_type=jnp.float32)
                     + bh_ref[...])

    # (2) Serial recurrence: only h @ W_hh remains on the latency-critical path.
    w_hh = whh_ref[...]            # hoisted loop-invariant load
    cdt = w_hh.dtype

    def step(t, carry):
        r0 = pl.multiple_of(t * Bblk, Bblk)
        pre = prex_scr[pl.ds(r0, Bblk), :] + jnp.dot(
            h_scr[...].astype(cdt), w_hh, preferred_element_type=jnp.float32)
        h_new = jnp.tanh(pre)
        h_scr[...] = h_new
        hs_scr[pl.ds(r0, Bblk), :] = h_new
        return carry

    lax.fori_loop(0, Tc, step, 0, unroll=min(8, Tc))

    # (3) Chunk-wide masking + hoisted output projection (one MXU matmul).
    mask = mask_ref[...]                                   # (Tc, Bblk, 1) f32
    h_all = hs_scr[...]                                    # (Tc*Bblk, Hp) f32
    hid_ref[...] = (h_all.reshape(Tc, Bblk, Hp) * mask).astype(hid_ref.dtype)

    out2 = (jnp.dot(h_all.astype(cdt), wout_ref[...],
                    preferred_element_type=jnp.float32) + bout_ref[...])
    out_ref[...] = (out2.reshape(Tc, Bblk, Dp) * mask).astype(out_ref.dtype)


def transducer_decoder_forward(inputs, input_lengths, params, *,
                               time_chunk=32, batch_block=64,
                               compute_dtype=jnp.bfloat16):
    """inputs: (B, T) int32 token ids; input_lengths: (B,) int32."""
    B, T = inputs.shape
    H = params["w_hh"].shape[0]
    D = params["w_out"].shape[1]

    # ---- padded / tiled shapes -------------------------------------------
    Hp = _round_up(H, 128)
    Dp = _round_up(D, 128)
    Bp0 = _round_up(B, 8)
    Bblk = min(batch_block, Bp0)          # batch_block is a multiple of 8
    Bp = _round_up(B, Bblk)
    Tc = min(time_chunk, T)
    Tp = _round_up(T, Tc)

    # ---- glue: pad, embed, transpose to time-major, build length mask ----
    tok = jnp.pad(inputs.astype(jnp.int32), ((0, Bp - B), (0, Tp - T)))
    lens = jnp.pad(input_lengths.astype(jnp.int32), (0, Bp - B))      # (Bp,)

    emb_tbl = jnp.pad(params["embedding"], ((0, 0), (0, Hp - H))).astype(compute_dtype)
    emb = jnp.take(emb_tbl, tok, axis=0)                              # (Bp,Tp,Hp)
    emb_tm = jnp.transpose(emb, (1, 0, 2))                            # (Tp,Bp,Hp)

    t_idx = jnp.arange(Tp, dtype=jnp.int32)[:, None]                  # (Tp,1)
    mask = (t_idx < lens[None, :]).astype(jnp.float32)[:, :, None]    # (Tp,Bp,1)

    def pad2(x, r, c):
        return jnp.pad(x, ((0, r - x.shape[0]), (0, c - x.shape[1])))

    w_ih = pad2(params["w_ih"], Hp, Hp).astype(compute_dtype)
    w_hh = pad2(params["w_hh"], Hp, Hp).astype(compute_dtype)
    b_h = pad2(params["b_h"], 1, Hp).astype(jnp.float32)
    w_out = pad2(params["w_out"], Hp, Dp).astype(compute_dtype)
    b_out = pad2(params["b_out"], 1, Dp).astype(jnp.float32)

    # ---- VMEM budget (double-buffered chunks + resident weights + scratch)
    cbytes = jnp.dtype(compute_dtype).itemsize
    chunk_in = Tc * Bblk * (Hp * cbytes + 4)           # emb + mask
    chunk_out = Tc * Bblk * (Hp + Dp) * 4              # hid + out (f32)
    weights = (2 * Hp * Hp + Hp * Dp) * cbytes + (Hp + Dp) * 4
    scratch = Bblk * Hp * 4 + 2 * Tc * Bblk * Hp * 4
    need = 2 * (chunk_in + chunk_out) + weights + scratch + (2 << 20)
    vmem_limit = int(min(max(need, 32 * 2**20), 64 * 2**20))

    grid = (Bp // Bblk, Tp // Tc)

    out_tm, hid_tm = pl.pallas_call(
        transducer_decoder_kernel,
        out_shape=(jax.ShapeDtypeStruct((Tp, Bp, Dp), jnp.float32),
                   jax.ShapeDtypeStruct((Tp, Bp, Hp), jnp.float32)),
        grid=grid,
        in_specs=[
            pl.BlockSpec((Tc, Bblk, Hp), lambda b, t: (t, b, 0)),   # emb
            pl.BlockSpec((Tc, Bblk, 1), lambda b, t: (t, b, 0)),    # mask
            pl.BlockSpec((Hp, Hp), lambda b, t: (0, 0)),            # w_ih (resident)
            pl.BlockSpec((Hp, Hp), lambda b, t: (0, 0)),            # w_hh (resident)
            pl.BlockSpec((1, Hp), lambda b, t: (0, 0)),             # b_h
            pl.BlockSpec((Hp, Dp), lambda b, t: (0, 0)),            # w_out (resident)
            pl.BlockSpec((1, Dp), lambda b, t: (0, 0)),             # b_out
        ],
        out_specs=(
            pl.BlockSpec((Tc, Bblk, Dp), lambda b, t: (t, b, 0)),   # decoder_outputs
            pl.BlockSpec((Tc, Bblk, Hp), lambda b, t: (t, b, 0)),   # hidden_states
        ),
        scratch_shapes=[
            pltpu.VMEM((Bblk, Hp), jnp.float32),        # carried h
            pltpu.VMEM((Tc * Bblk, Hp), jnp.float32),   # hoisted input projection
            pltpu.VMEM((Tc * Bblk, Hp), jnp.float32),   # chunk hidden states
        ],
        compiler_params=pltpu.CompilerParams(
            dimension_semantics=("parallel", "arbitrary"),
            vmem_limit_bytes=vmem_limit),
    )(emb_tm, mask, w_ih, w_hh, b_h, w_out, b_out)

    decoder_outputs = jnp.transpose(out_tm, (1, 0, 2))[:B, :T, :D]
    hidden_states = jnp.transpose(hid_tm, (1, 0, 2))[:B, :T, :H]
    return decoder_outputs, hidden_states


def init_params(key, vocab_size, hidden_dim, out_dim):
    ks = jax.random.split(key, 5)
    scale = 0.1
    return {
        "embedding": scale * jax.random.normal(ks[0], (vocab_size, hidden_dim), jnp.float32),
        "w_ih": scale * jax.random.normal(ks[1], (hidden_dim, hidden_dim), jnp.float32),
        "w_hh": scale * jax.random.normal(ks[2], (hidden_dim, hidden_dim), jnp.float32),
        "b_h": jnp.zeros((1, hidden_dim), jnp.float32),
        "w_out": scale * jax.random.normal(ks[3], (hidden_dim, out_dim), jnp.float32),
        "b_out": jnp.zeros((1, out_dim), jnp.float32),
    }


def _reference_forward(inputs, input_lengths, params, compute_dtype=jnp.bfloat16):
    """Pure-JAX reference mirroring the kernel's mixed precision (bf16 matmul
    inputs, f32 accumulation / tanh / mask)."""
    B, T = inputs.shape
    H = params["w_hh"].shape[0]
    emb = jnp.take(params["embedding"].astype(compute_dtype), inputs, axis=0)  # (B,T,H)
    w_ih = params["w_ih"].astype(compute_dtype)
    w_hh = params["w_hh"].astype(compute_dtype)
    w_out = params["w_out"].astype(compute_dtype)
    b_h = params["b_h"].astype(jnp.float32)
    b_out = params["b_out"].astype(jnp.float32)
    lens = input_lengths.astype(jnp.int32)

    def step(h_prev, xs):
        x_t, t = xs
        pre = (jnp.dot(x_t, w_ih, preferred_element_type=jnp.float32)
               + jnp.dot(h_prev.astype(compute_dtype), w_hh,
                         preferred_element_type=jnp.float32)
               + b_h)
        h_new = jnp.tanh(pre)
        m = (t < lens).astype(jnp.float32)[:, None]
        h_m = h_new * m
        out = (jnp.dot(h_new.astype(compute_dtype), w_out,
                       preferred_element_type=jnp.float32) + b_out) * m
        return h_m, (out, h_m)

    h0 = jnp.zeros((B, H), jnp.float32)
    _, (outs, hids) = lax.scan(step, h0,
                               (jnp.transpose(emb, (1, 0, 2)), jnp.arange(T)))
    return jnp.transpose(outs, (1, 0, 2)), jnp.transpose(hids, (1, 0, 2))


if __name__ == "__main__":
    B, T, VOCAB, H, D = 2, 8, 16, 32, 32

    key = jax.random.PRNGKey(0)
    k_tok, k_par = jax.random.split(key)
    inputs = jax.random.randint(k_tok, (B, T), 0, VOCAB, dtype=jnp.int32)
    input_lengths = jnp.array([8, 5], dtype=jnp.int32)
    params = init_params(k_par, VOCAB, H, D)

    fwd = jax.jit(transducer_decoder_forward)
    dec_out, hid = fwd(inputs, input_lengths, params)
    dec_out = jax.block_until_ready(dec_out)
    hid = jax.block_until_ready(hid)

    ref_out, ref_hid = _reference_forward(inputs, input_lengths, params)
    assert dec_out.shape == (B, T, D) and hid.shape == (B, T, H)
    assert jnp.allclose(dec_out, ref_out, atol=2e-3), "decoder_outputs mismatch"
    assert jnp.allclose(hid, ref_hid, atol=2e-3), "hidden_states mismatch"

    print("KERNEL_OK")
</pallas_src>

<mosaic_0001>
module attributes {stable_mosaic.version = 11 : i64} {
  func.func @transducer_decoder_kernel(%arg0: i32, %arg1: i32, %arg2: memref<8x8x128xbf16, #tpu.memory_space<vmem>>, %arg3: memref<8x8x1xf32, #tpu.memory_space<vmem>>, %arg4: memref<128x128xbf16, #tpu.memory_space<vmem>>, %arg5: memref<128x128xbf16, #tpu.memory_space<vmem>>, %arg6: memref<1x128xf32, #tpu.memory_space<vmem>>, %arg7: memref<128x128xbf16, #tpu.memory_space<vmem>>, %arg8: memref<1x128xf32, #tpu.memory_space<vmem>>, %arg9: memref<8x8x128xf32, #tpu.memory_space<vmem>>, %arg10: memref<8x8x128xf32, #tpu.memory_space<vmem>>, %arg11: memref<8x128xf32, #tpu.memory_space<vmem>>, %arg12: memref<64x128xf32, #tpu.memory_space<vmem>>, %arg13: memref<64x128xf32, #tpu.memory_space<vmem>>) attributes {dimension_semantics = [#tpu.dimension_semantics<parallel>, #tpu.dimension_semantics<arbitrary>], iteration_bounds = array<i64: 1, 1>, scalar_prefetch = 0 : i64, scratch_operands = 3 : i64, tpu.core_type = #tpu.core_type<tc>, window_params = [{transform_indices = @transform_0, window_bounds = array<i64: 8, 8, 128>}, {transform_indices = @transform_1, window_bounds = array<i64: 8, 8, 1>}, {pipeline_mode = #tpu.pipeline_mode<synchronous>, transform_indices = @transform_2, window_bounds = array<i64: 128, 128>}, {pipeline_mode = #tpu.pipeline_mode<synchronous>, transform_indices = @transform_3, window_bounds = array<i64: 128, 128>}, {pipeline_mode = #tpu.pipeline_mode<synchronous>, transform_indices = @transform_4, window_bounds = array<i64: 1, 128>}, {pipeline_mode = #tpu.pipeline_mode<synchronous>, transform_indices = @transform_5, window_bounds = array<i64: 128, 128>}, {pipeline_mode = #tpu.pipeline_mode<synchronous>, transform_indices = @transform_6, window_bounds = array<i64: 1, 128>}, {transform_indices = @transform_7, window_bounds = array<i64: 8, 8, 128>}, {transform_indices = @transform_8, window_bounds = array<i64: 8, 8, 128>}]} {
    %c0_i32 = arith.constant 0 : i32
    %0 = arith.cmpi eq, %arg1, %c0_i32 : i32
    %1 = arith.extui %0 : i1 to i32
    %c0_i32_0 = arith.constant 0 : i32
    %2 = arith.cmpi ne, %1, %c0_i32_0 : i32
    scf.if %2 {
      %cst_92 = arith.constant 0.000000e+00 : f32
      %124 = vector.broadcast %cst_92 : f32 to vector<8x128xf32>
      %c0_93 = arith.constant 0 : index
      %c0_94 = arith.constant 0 : index
      %125 = vector.load %arg11[%c0_93, %c0_94] : memref<8x128xf32, #tpu.memory_space<vmem>>, vector<8x128xf32>
      tpu.vector_store %arg11[%c0_93, %c0_94], %124 {strides = array<i32>} : memref<8x128xf32, #tpu.memory_space<vmem>>, vector<8x128xf32>,
    } else {
    }
    %c0 = arith.constant 0 : index
    %c0_1 = arith.constant 0 : index
    %c0_2 = arith.constant 0 : index
    %3 = vector.load %arg2[%c0, %c0_1, %c0_2] : memref<8x8x128xbf16, #tpu.memory_space<vmem>>, vector<8x8x128xbf16>
    %4 = vector.shape_cast %3 : vector<8x8x128xbf16> to vector<64x128xbf16>
    %c0_3 = arith.constant 0 : index
    %c0_4 = arith.constant 0 : index
    %5 = vector.load %arg4[%c0_3, %c0_4] : memref<128x128xbf16, #tpu.memory_space<vmem>>, vector<128x128xbf16>
    %cst = arith.constant dense<0.000000e+00> : vector<64x128xf32>
    %6 = tpu.matmul %4, %5, %cst {dimension_numbers = #tpu.dot_dimension_numbers<[1], [0], [0], [1], [0, 0, 1, 1], [], []>} : vector<64x128xbf16>, vector<128x128xbf16>, vector<64x128xf32> -> vector<64x128xf32>
    %c0_5 = arith.constant 0 : index
    %c0_6 = arith.constant 0 : index
    %7 = vector.load %arg6[%c0_5, %c0_6] : memref<1x128xf32, #tpu.memory_space<vmem>>, vector<1x128xf32>
    %8 = vector.broadcast %7 : vector<1x128xf32> to vector<64x128xf32>
    %9 = arith.addf %6, %8 : vector<64x128xf32>
    %c0_7 = arith.constant 0 : index
    %c0_8 = arith.constant 0 : index
    %10 = vector.load %arg12[%c0_7, %c0_8] : memref<64x128xf32, #tpu.memory_space<vmem>>, vector<64x128xf32>
    tpu.vector_store %arg12[%c0_7, %c0_8], %9 {strides = array<i32>} : memref<64x128xf32, #tpu.memory_space<vmem>>, vector<64x128xf32>,
    %c0_9 = arith.constant 0 : index
    %c0_10 = arith.constant 0 : index
    %11 = vector.load %arg5[%c0_9, %c0_10] : memref<128x128xbf16, #tpu.memory_space<vmem>>, vector<128x128xbf16>
    %c0_i32_11 = arith.constant 0 : i32
    %c8_i32 = arith.constant 8 : i32
    %12 = arith.muli %c0_i32_11, %c8_i32 : i32
    %13 = tpu.assume_multiple %12, 8 : i32
    %14 = arith.index_cast %13 : i32 to index
    %c0_12 = arith.constant 0 : index
    %15 = vector.load %arg12[%14, %c0_12] : memref<64x128xf32, #tpu.memory_space<vmem>>, vector<8x128xf32>
    %c0_13 = arith.constant 0 : index
    %c0_14 = arith.constant 0 : index
    %16 = vector.load %arg11[%c0_13, %c0_14] : memref<8x128xf32, #tpu.memory_space<vmem>>, vector<8x128xf32>
    %17 = arith.truncf %16 : vector<8x128xf32> to vector<8x128xbf16>
    %cst_15 = arith.constant dense<0.000000e+00> : vector<8x128xf32>
    %18 = tpu.matmul %17, %11, %cst_15 {dimension_numbers = #tpu.dot_dimension_numbers<[1], [0], [0], [1], [0, 0, 1, 1], [], []>} : vector<8x128xbf16>, vector<128x128xbf16>, vector<8x128xf32> -> vector<8x128xf32>
    %19 = arith.addf %15, %18 : vector<8x128xf32>
    %20 = math.tanh %19 : vector<8x128xf32>
    %c0_16 = arith.constant 0 : index
    %c0_17 = arith.constant 0 : index
    %21 = vector.load %arg11[%c0_16, %c0_17] : memref<8x128xf32, #tpu.memory_space<vmem>>, vector<8x128xf32>
    tpu.vector_store %arg11[%c0_16, %c0_17], %20 {strides = array<i32>} : memref<8x128xf32, #tpu.memory_space<vmem>>, vector<8x128xf32>,
    %22 = arith.index_cast %13 : i32 to index
    %c0_18 = arith.constant 0 : index
    %23 = vector.load %arg13[%22, %c0_18] : memref<64x128xf32, #tpu.memory_space<vmem>>, vector<8x128xf32>
    tpu.vector_store %arg13[%22, %c0_18], %20 {strides = array<i32>} : memref<64x128xf32, #tpu.memory_space<vmem>>, vector<8x128xf32>,
    %c1_i32 = arith.constant 1 : i32
    %c8_i32_19 = arith.constant 8 : i32
    %24 = arith.muli %c1_i32, %c8_i32_19 : i32
    %25 = tpu.assume_multiple %24, 8 : i32
    %26 = arith.index_cast %25 : i32 to index
    %c0_20 = arith.constant 0 : index
    %27 = vector.load %arg12[%26, %c0_20] : memref<64x128xf32, #tpu.memory_space<vmem>>, vector<8x128xf32>
    %c0_21 = arith.constant 0 : index
    %c0_22 = arith.constant 0 : index
    %28 = vector.load %arg11[%c0_21, %c0_22] : memref<8x128xf32, #tpu.memory_space<vmem>>, vector<8x128xf32>
    %29 = arith.truncf %28 : vector<8x128xf32> to vector<8x128xbf16>
    %cst_23 = arith.constant dense<0.000000e+00> : vector<8x128xf32>
    %30 = tpu.matmul %29, %11, %cst_23 {dimension_numbers = #tpu.dot_dimension_numbers<[1], [0], [0], [1], [0, 0, 1, 1], [], []>} : vector<8x128xbf16>, vector<128x128xbf16>, vector<8x128xf32> -> vector<8x128xf32>
    %31 = arith.addf %27, %30 : vector<8x128xf32>
    %32 = math.tanh %31 : vector<8x128xf32>
    %c0_24 = arith.constant 0 : index
    %c0_25 = arith.constant 0 : index
    %33 = vector.load %arg11[%c0_24, %c0_25] : memref<8x128xf32, #tpu.memory_space<vmem>>, vector<8x128xf32>
    tpu.vector_store %arg11[%c0_24, %c0_25], %32 {strides = array<i32>} : memref<8x128xf32, #tpu.memory_space<vmem>>, vector<8x128xf32>,
    %34 = arith.index_cast %25 : i32 to index
    %c0_26 = arith.constant 0 : index
    %35 = vector.load %arg13[%34, %c0_26] : memref<64x128xf32, #tpu.memory_space<vmem>>, vector<8x128xf32>
    tpu.vector_store %arg13[%34, %c0_26], %32 {strides = array<i32>} : memref<64x128xf32, #tpu.memory_space<vmem>>, vector<8x128xf32>,
    %c2_i32 = arith.constant 2 : i32
    %c8_i32_27 = arith.constant 8 : i32
    %36 = arith.muli %c2_i32, %c8_i32_27 : i32
    %37 = tpu.assume_multiple %36, 8 : i32
    %38 = arith.index_cast %37 : i32 to index
    %c0_28 = arith.constant 0 : index
    %39 = vector.load %arg12[%38, %c0_28] : memref<64x128xf32, #tpu.memory_space<vmem>>, vector<8x128xf32>
    %c0_29 = arith.constant 0 : index
    %c0_30 = arith.constant 0 : index
    %40 = vector.load %arg11[%c0_29, %c0_30] : memref<8x128xf32, #tpu.memory_space<vmem>>, vector<8x128xf32>
    %41 = arith.truncf %40 : vector<8x128xf32> to vector<8x128xbf16>
    %cst_31 = arith.constant dense<0.000000e+00> : vector<8x128xf32>
    %42 = tpu.matmul %41, %11, %cst_31 {dimension_numbers = #tpu.dot_dimension_numbers<[1], [0], [0], [1], [0, 0, 1, 1], [], []>} : vector<8x128xbf16>, vector<128x128xbf16>, vector<8x128xf32> -> vector<8x128xf32>
    %43 = arith.addf %39, %42 : vector<8x128xf32>
    %44 = math.tanh %43 : vector<8x128xf32>
    %c0_32 = arith.constant 0 : index
    %c0_33 = arith.constant 0 : index
    %45 = vector.load %arg11[%c0_32, %c0_33] : memref<8x128xf32, #tpu.memory_space<vmem>>, vector<8x128xf32>
    tpu.vector_store %arg11[%c0_32, %c0_33], %44 {strides = array<i32>} : memref<8x128xf32, #tpu.memory_space<vmem>>, vector<8x128xf32>,
    %46 = arith.index_cast %37 : i32 to index
    %c0_34 = arith.constant 0 : index
    %47 = vector.load %arg13[%46, %c0_34] : memref<64x128xf32, #tpu.memory_space<vmem>>, vector<8x128xf32>
    tpu.vector_store %arg13[%46, %c0_34], %44 {strides = array<i32>} : memref<64x128xf32, #tpu.memory_space<vmem>>, vector<8x128xf32>,
    %c3_i32 = arith.constant 3 : i32
    %c8_i32_35 = arith.constant 8 : i32
    %48 = arith.muli %c3_i32, %c8_i32_35 : i32
    %49 = tpu.assume_multiple %48, 8 : i32
    %50 = arith.index_cast %49 : i32 to index
    %c0_36 = arith.constant 0 : index
    %51 = vector.load %arg12[%50, %c0_36] : memref<64x128xf32, #tpu.memory_space<vmem>>, vector<8x128xf32>
    %c0_37 = arith.constant 0 : index
    %c0_38 = arith.constant 0 : index
    %52 = vector.load %arg11[%c0_37, %c0_38] : memref<8x128xf32, #tpu.memory_space<vmem>>, vector<8x128xf32>
    %53 = arith.truncf %52 : vector<8x128xf32> to vector<8x128xbf16>
    %cst_39 = arith.constant dense<0.000000e+00> : vector<8x128xf32>
    %54 = tpu.matmul %53, %11, %cst_39 {dimension_numbers = #tpu.dot_dimension_numbers<[1], [0], [0], [1], [0, 0, 1, 1], [], []>} : vector<8x128xbf16>, vector<128x128xbf16>, vector<8x128xf32> -> vector<8x128xf32>
    %55 = arith.addf %51, %54 : vector<8x128xf32>
    %56 = math.tanh %55 : vector<8x128xf32>
    %c0_40 = arith.constant 0 : index
    %c0_41 = arith.constant 0 : index
    %57 = vector.load %arg11[%c0_40, %c0_41] : memref<8x128xf32, #tpu.memory_space<vmem>>, vector<8x128xf32>
    tpu.vector_store %arg11[%c0_40, %c0_41], %56 {strides = array<i32>} : memref<8x128xf32, #tpu.memory_space<vmem>>, vector<8x128xf32>,
    %58 = arith.index_cast %49 : i32 to index
    %c0_42 = arith.constant 0 : index
    %59 = vector.load %arg13[%58, %c0_42] : memref<64x128xf32, #tpu.memory_space<vmem>>, vector<8x128xf32>
    tpu.vector_store %arg13[%58, %c0_42], %56 {strides = array<i32>} : memref<64x128xf32, #tpu.memory_space<vmem>>, vector<8x128xf32>,
    %c4_i32 = arith.constant 4 : i32
    %c8_i32_43 = arith.constant 8 : i32
    %60 = arith.muli %c4_i32, %c8_i32_43 : i32
    %61 = tpu.assume_multiple %60, 8 : i32
    %62 = arith.index_cast %61 : i32 to index
    %c0_44 = arith.constant 0 : index
    %63 = vector.load %arg12[%62, %c0_44] : memref<64x128xf32, #tpu.memory_space<vmem>>, vector<8x128xf32>
    %c0_45 = arith.constant 0 : index
    %c0_46 = arith.constant 0 : index
    %64 = vector.load %arg11[%c0_45, %c0_46] : memref<8x128xf32, #tpu.memory_space<vmem>>, vector<8x128xf32>
    %65 = arith.truncf %64 : vector<8x128xf32> to vector<8x128xbf16>
    %cst_47 = arith.constant dense<0.000000e+00> : vector<8x128xf32>
    %66 = tpu.matmul %65, %11, %cst_47 {dimension_numbers = #tpu.dot_dimension_numbers<[1], [0], [0], [1], [0, 0, 1, 1], [], []>} : vector<8x128xbf16>, vector<128x128xbf16>, vector<8x128xf32> -> vector<8x128xf32>
    %67 = arith.addf %63, %66 : vector<8x128xf32>
    %68 = math.tanh %67 : vector<8x128xf32>
    %c0_48 = arith.constant 0 : index
    %c0_49 = arith.constant 0 : index
    %69 = vector.load %arg11[%c0_48, %c0_49] : memref<8x128xf32, #tpu.memory_space<vmem>>, vector<8x128xf32>
    tpu.vector_store %arg11[%c0_48, %c0_49], %68 {strides = array<i32>} : memref<8x128xf32, #tpu.memory_space<vmem>>, vector<8x128xf32>,
    %70 = arith.index_cast %61 : i32 to index
    %c0_50 = arith.constant 0 : index
    %71 = vector.load %arg13[%70, %c0_50] : memref<64x128xf32, #tpu.memory_space<vmem>>, vector<8x128xf32>
    tpu.vector_store %arg13[%70, %c0_50], %68 {strides = array<i32>} : memref<64x128xf32, #tpu.memory_space<vmem>>, vector<8x128xf32>,
    %c5_i32 = arith.constant 5 : i32
    %c8_i32_51 = arith.constant 8 : i32
    %72 = arith.muli %c5_i32, %c8_i32_51 : i32
    %73 = tpu.assume_multiple %72, 8 : i32
    %74 = arith.index_cast %73 : i32 to index
    %c0_52 = arith.constant 0 : index
    %75 = vector.load %arg12[%74, %c0_52] : memref<64x128xf32, #tpu.memory_space<vmem>>, vector<8x128xf32>
    %c0_53 = arith.constant 0 : index
    %c0_54 = arith.constant 0 : index
    %76 = vector.load %arg11[%c0_53, %c0_54] : memref<8x128xf32, #tpu.memory_space<vmem>>, vector<8x128xf32>
    %77 = arith.truncf %76 : vector<8x128xf32> to vector<8x128xbf16>
    %cst_55 = arith.constant dense<0.000000e+00> : vector<8x128xf32>
    %78 = tpu.matmul %77, %11, %cst_55 {dimension_numbers = #tpu.dot_dimension_numbers<[1], [0], [0], [1], [0, 0, 1, 1], [], []>} : vector<8x128xbf16>, vector<128x128xbf16>, vector<8x128xf32> -> vector<8x128xf32>
    %79 = arith.addf %75, %78 : vector<8x128xf32>
    %80 = math.tanh %79 : vector<8x128xf32>
    %c0_56 = arith.constant 0 : index
    %c0_57 = arith.constant 0 : index
    %81 = vector.load %arg11[%c0_56, %c0_57] : memref<8x128xf32, #tpu.memory_space<vmem>>, vector<8x128xf32>
    tpu.vector_store %arg11[%c0_56, %c0_57], %80 {strides = array<i32>} : memref<8x128xf32, #tpu.memory_space<vmem>>, vector<8x128xf32>,
    %82 = arith.index_cast %73 : i32 to index
    %c0_58 = arith.constant 0 : index
    %83 = vector.load %arg13[%82, %c0_58] : memref<64x128xf32, #tpu.memory_space<vmem>>, vector<8x128xf32>
    tpu.vector_store %arg13[%82, %c0_58], %80 {strides = array<i32>} : memref<64x128xf32, #tpu.memory_space<vmem>>, vector<8x128xf32>,
    %c6_i32 = arith.constant 6 : i32
    %c8_i32_59 = arith.constant 8 : i32
    %84 = arith.muli %c6_i32, %c8_i32_59 : i32
    %85 = tpu.assume_multiple %84, 8 : i32
    %86 = arith.index_cast %85 : i32 to index
    %c0_60 = arith.constant 0 : index
    %87 = vector.load %arg12[%86, %c0_60] : memref<64x128xf32, #tpu.memory_space<vmem>>, vector<8x128xf32>
    %c0_61 = arith.constant 0 : index
    %c0_62 = arith.constant 0 : index
    %88 = vector.load %arg11[%c0_61, %c0_62] : memref<8x128xf32, #tpu.memory_space<vmem>>, vector<8x128xf32>
    %89 = arith.truncf %88 : vector<8x128xf32> to vector<8x128xbf16>
    %cst_63 = arith.constant dense<0.000000e+00> : vector<8x128xf32>
    %90 = tpu.matmul %89, %11, %cst_63 {dimension_numbers = #tpu.dot_dimension_numbers<[1], [0], [0], [1], [0, 0, 1, 1], [], []>} : vector<8x128xbf16>, vector<128x128xbf16>, vector<8x128xf32> -> vector<8x128xf32>
    %91 = arith.addf %87, %90 : vector<8x128xf32>
    %92 = math.tanh %91 : vector<8x128xf32>
    %c0_64 = arith.constant 0 : index
    %c0_65 = arith.constant 0 : index
    %93 = vector.load %arg11[%c0_64, %c0_65] : memref<8x128xf32, #tpu.memory_space<vmem>>, vector<8x128xf32>
    tpu.vector_store %arg11[%c0_64, %c0_65], %92 {strides = array<i32>} : memref<8x128xf32, #tpu.memory_space<vmem>>, vector<8x128xf32>,
    %94 = arith.index_cast %85 : i32 to index
    %c0_66 = arith.constant 0 : index
    %95 = vector.load %arg13[%94, %c0_66] : memref<64x128xf32, #tpu.memory_space<vmem>>, vector<8x128xf32>
    tpu.vector_store %arg13[%94, %c0_66], %92 {strides = array<i32>} : memref<64x128xf32, #tpu.memory_space<vmem>>, vector<8x128xf32>,
    %c7_i32 = arith.constant 7 : i32
    %c8_i32_67 = arith.constant 8 : i32
    %96 = arith.muli %c7_i32, %c8_i32_67 : i32
    %97 = tpu.assume_multiple %96, 8 : i32
    %98 = arith.index_cast %97 : i32 to index
    %c0_68 = arith.constant 0 : index
    %99 = vector.load %arg12[%98, %c0_68] : memref<64x128xf32, #tpu.memory_space<vmem>>, vector<8x128xf32>
    %c0_69 = arith.constant 0 : index
    %c0_70 = arith.constant 0 : index
    %100 = vector.load %arg11[%c0_69, %c0_70] : memref<8x128xf32, #tpu.memory_space<vmem>>, vector<8x128xf32>
    %101 = arith.truncf %100 : vector<8x128xf32> to vector<8x128xbf16>
    %cst_71 = arith.constant dense<0.000000e+00> : vector<8x128xf32>
    %102 = tpu.matmul %101, %11, %cst_71 {dimension_numbers = #tpu.dot_dimension_numbers<[1], [0], [0], [1], [0, 0, 1, 1], [], []>} : vector<8x128xbf16>, vector<128x128xbf16>, vector<8x128xf32> -> vector<8x128xf32>
    %103 = arith.addf %99, %102 : vector<8x128xf32>
    %104 = math.tanh %103 : vector<8x128xf32>
    %c0_72 = arith.constant 0 : index
    %c0_73 = arith.constant 0 : index
    %105 = vector.load %arg11[%c0_72, %c0_73] : memref<8x128xf32, #tpu.memory_space<vmem>>, vector<8x128xf32>
    tpu.vector_store %arg11[%c0_72, %c0_73], %104 {strides = array<i32>} : memref<8x128xf32, #tpu.memory_space<vmem>>, vector<8x128xf32>,
    %106 = arith.index_cast %97 : i32 to index
    %c0_74 = arith.constant 0 : index
    %107 = vector.load %arg13[%106, %c0_74] : memref<64x128xf32, #tpu.memory_space<vmem>>, vector<8x128xf32>
    tpu.vector_store %arg13[%106, %c0_74], %104 {strides = array<i32>} : memref<64x128xf32, #tpu.memory_space<vmem>>, vector<8x128xf32>,
    %c8_i32_75 = arith.constant 8 : i32
    %c0_76 = arith.constant 0 : index
    %c0_77 = arith.constant 0 : index
    %c0_78 = arith.constant 0 : index
    %108 = vector.load %arg3[%c0_76, %c0_77, %c0_78] : memref<8x8x1xf32, #tpu.memory_space<vmem>>, vector<8x8x1xf32>
    %c0_79 = arith.constant 0 : index
    %c0_80 = arith.constant 0 : index
    %109 = vector.load %arg13[%c0_79, %c0_80] : memref<64x128xf32, #tpu.memory_space<vmem>>, vector<64x128xf32>
    %110 = vector.shape_cast %109 : vector<64x128xf32> to vector<8x8x128xf32>
    %111 = vector.broadcast %108 : vector<8x8x1xf32> to vector<8x8x128xf32>
    %112 = arith.mulf %110, %111 : vector<8x8x128xf32>
    %c0_81 = arith.constant 0 : index
    %c0_82 = arith.constant 0 : index
    %c0_83 = arith.constant 0 : index
    %113 = vector.load %arg10[%c0_81, %c0_82, %c0_83] : memref<8x8x128xf32, #tpu.memory_space<vmem>>, vector<8x8x128xf32>
    tpu.vector_store %arg10[%c0_81, %c0_82, %c0_83], %112 {strides = array<i32>} : memref<8x8x128xf32, #tpu.memory_space<vmem>>, vector<8x8x128xf32>,
    %114 = arith.truncf %109 : vector<64x128xf32> to vector<64x128xbf16>
    %c0_84 = arith.constant 0 : index
    %c0_85 = arith.constant 0 : index
    %115 = vector.load %arg7[%c0_84, %c0_85] : memref<128x128xbf16, #tpu.memory_space<vmem>>, vector<128x128xbf16>
    %cst_86 = arith.constant dense<0.000000e+00> : vector<64x128xf32>
    %116 = tpu.matmul %114, %115, %cst_86 {dimension_numbers = #tpu.dot_dimension_numbers<[1], [0], [0], [1], [0, 0, 1, 1], [], []>} : vector<64x128xbf16>, vector<128x128xbf16>, vector<64x128xf32> -> vector<64x128xf32>
    %c0_87 = arith.constant 0 : index
    %c0_88 = arith.constant 0 : index
    %117 = vector.load %arg8[%c0_87, %c0_88] : memref<1x128xf32, #tpu.memory_space<vmem>>, vector<1x128xf32>
    %118 = vector.broadcast %117 : vector<1x128xf32> to vector<64x128xf32>
    %119 = arith.addf %116, %118 : vector<64x128xf32>
    %120 = vector.shape_cast %119 : vector<64x128xf32> to vector<8x8x128xf32>
    %121 = vector.broadcast %108 : vector<8x8x1xf32> to vector<8x8x128xf32>
    %122 = arith.mulf %120, %121 : vector<8x8x128xf32>
    %c0_89 = arith.constant 0 : index
    %c0_90 = arith.constant 0 : index
    %c0_91 = arith.constant 0 : index
    %123 = vector.load %arg9[%c0_89, %c0_90, %c0_91] : memref<8x8x128xf32, #tpu.memory_space<vmem>>, vector<8x8x128xf32>
    tpu.vector_store %arg9[%c0_89, %c0_90, %c0_91], %122 {strides = array<i32>} : memref<8x8x128xf32, #tpu.memory_space<vmem>>, vector<8x8x128xf32>,
    return
  }
  func.func @transform_0(%arg0: i32, %arg1: i32) -> (i32, i32, i32) {
    %c0_i32 = arith.constant 0 : i32
    %c0_i32_0 = arith.constant 0 : i32
    return %arg1, %arg0, %c0_i32 : i32, i32, i32
  }
  func.func @transform_1(%arg0: i32, %arg1: i32) -> (i32, i32, i32) {
    %c0_i32 = arith.constant 0 : i32
    %c0_i32_0 = arith.constant 0 : i32
    return %arg1, %arg0, %c0_i32 : i32, i32, i32
  }
  func.func @transform_2(%arg0: i32, %arg1: i32) -> (i32, i32) {
    %c0_i32 = arith.constant 0 : i32
    %c0_i32_0 = arith.constant 0 : i32
    %c0_i32_1 = arith.constant 0 : i32
    return %c0_i32, %c0_i32_0 : i32, i32
  }
  func.func @transform_3(%arg0: i32, %arg1: i32) -> (i32, i32) {
    %c0_i32 = arith.constant 0 : i32
    %c0_i32_0 = arith.constant 0 : i32
    %c0_i32_1 = arith.constant 0 : i32
    return %c0_i32, %c0_i32_0 : i32, i32
  }
  func.func @transform_4(%arg0: i32, %arg1: i32) -> (i32, i32) {
    %c0_i32 = arith.constant 0 : i32
    %c0_i32_0 = arith.constant 0 : i32
    %c0_i32_1 = arith.constant 0 : i32
    return %c0_i32, %c0_i32_0 : i32, i32
  }
  func.func @transform_5(%arg0: i32, %arg1: i32) -> (i32, i32) {
    %c0_i32 = arith.constant 0 : i32
    %c0_i32_0 = arith.constant 0 : i32
    %c0_i32_1 = arith.constant 0 : i32
    return %c0_i32, %c0_i32_0 : i32, i32
  }
  func.func @transform_6(%arg0: i32, %arg1: i32) -> (i32, i32) {
    %c0_i32 = arith.constant 0 : i32
    %c0_i32_0 = arith.constant 0 : i32
    %c0_i32_1 = arith.constant 0 : i32
    return %c0_i32, %c0_i32_0 : i32, i32
  }
  func.func @transform_7(%arg0: i32, %arg1: i32) -> (i32, i32, i32) {
    %c0_i32 = arith.constant 0 : i32
    %c0_i32_0 = arith.constant 0 : i32
    return %arg1, %arg0, %c0_i32 : i32, i32, i32
  }
  func.func @transform_8(%arg0: i32, %arg1: i32) -> (i32, i32, i32) {
    %c0_i32 = arith.constant 0 : i32
    %c0_i32_0 = arith.constant 0 : i32
    return %arg1, %arg0, %c0_i32 : i32, i32, i32
  }
}

</mosaic_0001>

<llo_original>
// kernel: transducer_decoder_forward.1
$region0: #{transducer_decoder_forward.1}
  #allocation0 [shape = 'u32[]', space=smem, size = 0x4, offset = 0x4, fixed_abs, tag = 'smem constant byte address 0x4 - core index']
  #allocation1 [shape = 'u32[144,128]{1,0:T(1,128)}', space=vmem, size = 0x12000, scoped, tag = 'internal scratch']
  #allocation2 [shape = 'f32[8,128]{1,0:T(8,128)}', space=vmem, size = 0x1000, scoped, tag = 'scratch operand']
  #allocation3 [shape = 'f32[64,128]{1,0:T(8,128)}', space=vmem, size = 0x8000, scoped, tag = 'scratch operand']
  #allocation4 [shape = 'f32[64,128]{1,0:T(8,128)}', space=vmem, size = 0x8000, scoped, tag = 'scratch operand']
  %s0 = inlined_call_operand.vmem [shape: bf16[8,8,128], index: 0, kind: input, shape index: {}]
  %s1 = inlined_call_operand.vmem [shape: f32[8,8,1], index: 1, kind: input, shape index: {}]
  %s2 = inlined_call_operand.vmem [shape: bf16[128,128], index: 2, kind: input, shape index: {}]
  %s3 = inlined_call_operand.vmem [shape: bf16[128,128], index: 3, kind: input, shape index: {}]
  %s4 = inlined_call_operand.vmem [shape: f32[1,128], index: 4, kind: input, shape index: {}]
  %s5 = inlined_call_operand.vmem [shape: bf16[128,128], index: 5, kind: input, shape index: {}]
  %s6 = inlined_call_operand.vmem [shape: f32[1,128], index: 6, kind: input, shape index: {}]
  %s7 = inlined_call_operand.vmem [shape: f32[8,8,128], index: 7, kind: output, shape index: {0}]
  %s8 = inlined_call_operand.vmem [shape: f32[8,8,128], index: 8, kind: output, shape index: {1}]
  %9 = xla_tuple %s7, %s8
  %s10 = sld [smem:[#allocation0]]
  $region50: #{transducer_decoder_forward.1} parent=0
    _
  %s12 = ssub.s32 1, %s10
  %s13 = scalar_select 0, %s12, %s10
  // Predicated region
  $region2: #{transducer_decoder_forward.1} parent=0 // pred_check
    _
  $region3: #{transducer_decoder_forward.1} parent=0 // pred_check_branch
    %15 = sbr.rel (0) target = $region5
  $region4: #{transducer_decoder_forward.1} parent=0 // pred_region
    _
  $region5: #{transducer_decoder_forward.1} parent=0 // pred_fallthru
    _
  // Predicated region
  $region6: #{transducer_decoder_forward.1} parent=0 // pred_check
    _
  $region7: #{transducer_decoder_forward.1} parent=0 // pred_check_branch
    %17 = sbr.rel (0) target = $region9
  $region8: #{transducer_decoder_forward.1} parent=0 // pred_region
    _
  $region9: #{transducer_decoder_forward.1} parent=0 // pred_fallthru
    _
  // Predicated region
  $region10: #{transducer_decoder_forward.1} parent=0 // pred_check
    _
  $region11: #{transducer_decoder_forward.1} parent=0 // pred_check_branch
    %19 = sbr.rel (0) target = $region13
  $region12: #{transducer_decoder_forward.1} parent=0 // pred_region
    _
  $region13: #{transducer_decoder_forward.1} parent=0 // pred_fallthru
    _
  // Predicated region
  $region14: #{transducer_decoder_forward.1} parent=0 // pred_check
    _
  $region15: #{transducer_decoder_forward.1} parent=0 // pred_check_branch
    %21 = sbr.rel (0) target = $region17
  $region16: #{transducer_decoder_forward.1} parent=0 // pred_region
    _
  $region17: #{transducer_decoder_forward.1} parent=0 // pred_fallthru
    _
  // Predicated region
  $region18: #{transducer_decoder_forward.1} parent=0 // pred_check
    _
  $region19: #{transducer_decoder_forward.1} parent=0 // pred_check_branch
    %23 = sbr.rel (0) target = $region21
  $region20: #{transducer_decoder_forward.1} parent=0 // pred_region
    _
  $region21: #{transducer_decoder_forward.1} parent=0 // pred_fallthru
    _
  // Predicated region
  $region22: #{transducer_decoder_forward.1} parent=0 // pred_check
    _
  $region23: #{transducer_decoder_forward.1} parent=0 // pred_check_branch
    %25 = sbr.rel (0) target = $region25
  $region24: #{transducer_decoder_forward.1} parent=0 // pred_region
    _
  $region25: #{transducer_decoder_forward.1} parent=0 // pred_fallthru
    _
  // Predicated region
  $region26: #{transducer_decoder_forward.1} parent=0 // pred_check
    _
  $region27: #{transducer_decoder_forward.1} parent=0 // pred_check_branch
    %27 = sbr.rel (0) target = $region29
  $region28: #{transducer_decoder_forward.1} parent=0 // pred_region
    _
  $region29: #{transducer_decoder_forward.1} parent=0 // pred_fallthru
    _
  %p29 = scmp.eq.s32.totalorder 0, 0
  // Predicated region
  $region30: #{transducer_decoder_forward.1} parent=0 // pred_check
    %p30 = pneg %p29
  $region31: #{transducer_decoder_forward.1} parent=0 // pred_check_branch
    %32 = sbr.rel (%p30) target = $region33
  $region32: #{transducer_decoder_forward.1} parent=0 // pred_region
    %33 = vst [vmem:[#allocation2] sm:$0xff] 0.0
  $region33: #{transducer_decoder_forward.1} parent=0 // pred_fallthru
    _
  %v34 = vld [vmem:[%s0] sm:$0xf]
  %v35 = vld [vmem:[%s0 + $0x4] sm:$0xf]
  %v36 = vld [vmem:[%s0 + $0x8] sm:$0xf]
  %v37 = vld [vmem:[%s0 + $0xc] sm:$0xf]
  %v38 = vld [vmem:[%s0 + $0x10] sm:$0xf]
  %v39 = vld [vmem:[%s0 + $0x14] sm:$0xf]
  %v40 = vld [vmem:[%s0 + $0x18] sm:$0xf]
  %v41 = vld [vmem:[%s0 + $0x1c] sm:$0xf]
  %v42 = vld [vmem:[%s2] sm:$0xf]
  %v43 = vld [vmem:[%s2 + $0x4] sm:$0xf]
  %v44 = vld [vmem:[%s2 + $0x8] sm:$0xf]
  %v45 = vld [vmem:[%s2 + $0xc] sm:$0xf]
  %v46 = vld [vmem:[%s2 + $0x10] sm:$0xf]
  %v47 = vld [vmem:[%s2 + $0x14] sm:$0xf]
  %v48 = vld [vmem:[%s2 + $0x18] sm:$0xf]
  %v49 = vld [vmem:[%s2 + $0x1c] sm:$0xf]
  %v50 = vld [vmem:[%s2 + $0x20] sm:$0xf]
  %v51 = vld [vmem:[%s2 + $0x24] sm:$0xf]
  %v52 = vld [vmem:[%s2 + $0x28] sm:$0xf]
  %v53 = vld [vmem:[%s2 + $0x2c] sm:$0xf]
  %v54 = vld [vmem:[%s2 + $0x30] sm:$0xf]
  %v55 = vld [vmem:[%s2 + $0x34] sm:$0xf]
  %v56 = vld [vmem:[%s2 + $0x38] sm:$0xf]
  %v57 = vld [vmem:[%s2 + $0x3c] sm:$0xf]
  %v58 = vld [vmem:[%s4] sm:$0x1]
  %v60 = vlaneseq
  %v61 = vshrl.u32 %v60, 7
  %v62 = vsub.s32 0, %v61
  %v63 = vrot.slane %v58, %v62
  %v73 = vunpack.c.l.b16 %v34
  %v74 = vunpack.c.l.b16 %v35
  %v75 = vunpack.c.l.b16 %v36
  %v76 = vunpack.c.l.b16 %v37
  %v77 = vunpack.c.l.b16 %v38
  %v78 = vunpack.c.l.b16 %v39
  %v79 = vunpack.c.l.b16 %v40
  %v80 = vunpack.c.l.b16 %v41
  %v81 = vpack.c.b16 %v74, %v73
  %v82 = vpack.c.b16 %v76, %v75
  %v83 = vpack.c.b16 %v78, %v77
  %v84 = vpack.c.b16 %v80, %v79
  %v105 = vunpack.c.l.b16 %v42
  %v106 = vunpack.c.l.b16 %v43
  %v107 = vunpack.c.l.b16 %v44
  %v108 = vunpack.c.l.b16 %v45
  %v109 = vunpack.c.l.b16 %v46
  %v110 = vunpack.c.l.b16 %v47
  %v111 = vunpack.c.l.b16 %v48
  %v112 = vunpack.c.l.b16 %v49
  %v113 = vunpack.c.l.b16 %v50
  %v114 = vunpack.c.l.b16 %v51
  %v115 = vunpack.c.l.b16 %v52
  %v116 = vunpack.c.l.b16 %v53
  %v117 = vunpack.c.l.b16 %v54
  %v118 = vunpack.c.l.b16 %v55
  %v119 = vunpack.c.l.b16 %v56
  %v120 = vunpack.c.l.b16 %v57
  %v121 = vpack.c.b16 %v106, %v105
  %v122 = vpack.c.b16 %v108, %v107
  %v123 = vpack.c.b16 %v110, %v109
  %v124 = vpack.c.b16 %v112, %v111
  %v125 = vpack.c.b16 %v114, %v113
  %v126 = vpack.c.b16 %v116, %v115
  %v127 = vpack.c.b16 %v118, %v117
  %v128 = vpack.c.b16 %v120, %v119
  %137 = vmatprep.subr.bf16.mxu0 0
  %138 = vmatpush1.bf16.msra.mxu0 %v121
  %139 = vmatprep.subr.bf16.mxu0 0
  %140 = vmatpush1.bf16.msra.mxu0 %v122
  %141 = vmatprep.subr.bf16.mxu0 0
  %142 = vmatpush1.bf16.msra.mxu0 %v123
  %143 = vmatprep.subr.bf16.mxu0 0
  %144 = vmatpush1.bf16.msra.mxu0 %v124
  %145 = vmatprep.subr.bf16.mxu0 0
  %146 = vmatpush1.bf16.msra.mxu0 %v125
  %147 = vmatprep.subr.bf16.mxu0 0
  %148 = vmatpush1.bf16.msra.mxu0 %v126
  %149 = vmatprep.subr.bf16.mxu0 0
  %150 = vmatpush1.bf16.msra.mxu0 %v127
  %151 = vmatprep.subr.bf16.mxu0 0
  %152 = vmatpush1.bf16.msra.mxu0 %v128
  %153 = vmatprep.subr.bf16.mxu0 0
  %154 = vmatpush1.bf16.msra.mxu0 0
  %155 = vmatprep.subr.bf16.mxu0 0
  %156 = vmatpush1.bf16.msra.mxu0 0
  %157 = vmatprep.subr.bf16.mxu0 0
  %158 = vmatpush1.bf16.msra.mxu0 0
  %159 = vmatprep.subr.bf16.mxu0 0
  %160 = vmatpush1.bf16.msra.mxu0 0
  %161 = vmatprep.subr.bf16.mxu0 0
  %162 = vmatpush1.bf16.msra.mxu0 0
  %163 = vmatprep.subr.bf16.mxu0 0
  %164 = vmatpush1.bf16.msra.mxu0 0
  %165 = vmatprep.subr.bf16.mxu0 0
  %166 = vmatpush1.bf16.msra.mxu0 0
  %167 = vmatprep.subr.bf16.mxu0 0
  %168 = vmatpush1.bf16.msra.mxu0 0
  %169 = vmatprep.mubr.bf16.mxu0 0
  %170 = vmatmul.mubr.bf16.gmra.mrb[0].mxu0 %v81
  %v171 = vpop.f32.mrb[0].mxu0
  %v172 = vadd.f32 %v63, %v171
  %v173 = vpop.f32.mrb[0].mxu0
  %v174 = vpop.f32.mrb[0].mxu0
  %v175 = vadd.f32 %v63, %v174
  %v176 = vpop.f32.mrb[0].mxu0
  %177 = vmatprep.mubr.bf16.mxu0 0
  %178 = vmatmul.mubr.bf16.gmra.mrb[0].mxu0 %v82
  %v179 = vpop.f32.mrb[0].mxu0
  %v180 = vadd.f32 %v63, %v179
  %v181 = vpop.f32.mrb[0].mxu0
  %v182 = vpop.f32.mrb[0].mxu0
  %v183 = vadd.f32 %v63, %v182
  %v184 = vpop.f32.mrb[0].mxu0
  %185 = vmatprep.mubr.bf16.mxu0 0
  %186 = vmatmul.mubr.bf16.gmra.mrb[0].mxu0 %v83
  %v187 = vpop.f32.mrb[0].mxu0
  %v188 = vadd.f32 %v63, %v187
  %v189 = vpop.f32.mrb[0].mxu0
  %v190 = vpop.f32.mrb[0].mxu0
  %v191 = vadd.f32 %v63, %v190
  %v192 = vpop.f32.mrb[0].mxu0
  %193 = vmatprep.mubr.bf16.mxu0 0
  %194 = vmatmul.mubr.bf16.gmra.mrb[0].mxu0 %v84
  %v195 = vpop.f32.mrb[0].mxu0
  %v196 = vadd.f32 %v63, %v195
  %v197 = vpop.f32.mrb[0].mxu0
  %v198 = vpop.f32.mrb[0].mxu0
  %v199 = vadd.f32 %v63, %v198
  %v200 = vpop.f32.mrb[0].mxu0
  %201 = vdwg.mxu0
  %202 = vst [vmem:[#allocation3] sm:$0xff] %v172
  %203 = vst [vmem:[#allocation3 + $0x8] sm:$0xff] %v175
  %204 = vst [vmem:[#allocation3 + $0x10] sm:$0xff] %v180
  %205 = vst [vmem:[#allocation3 + $0x18] sm:$0xff] %v183
  %206 = vst [vmem:[#allocation3 + $0x20] sm:$0xff] %v188
  %207 = vst [vmem:[#allocation3 + $0x28] sm:$0xff] %v191
  %208 = vst [vmem:[#allocation3 + $0x30] sm:$0xff] %v196
  %209 = vst [vmem:[#allocation3 + $0x38] sm:$0xff] %v199
  %v210 = vld [vmem:[%s3] sm:$0xf]
  %v211 = vld [vmem:[%s3 + $0x4] sm:$0xf]
  %v212 = vld [vmem:[%s3 + $0x8] sm:$0xf]
  %v213 = vld [vmem:[%s3 + $0xc] sm:$0xf]
  %v214 = vld [vmem:[%s3 + $0x10] sm:$0xf]
  %v215 = vld [vmem:[%s3 + $0x14] sm:$0xf]
  %v216 = vld [vmem:[%s3 + $0x18] sm:$0xf]
  %v217 = vld [vmem:[%s3 + $0x1c] sm:$0xf]
  %v218 = vld [vmem:[%s3 + $0x20] sm:$0xf]
  %v219 = vld [vmem:[%s3 + $0x24] sm:$0xf]
  %v220 = vld [vmem:[%s3 + $0x28] sm:$0xf]
  %v221 = vld [vmem:[%s3 + $0x2c] sm:$0xf]
  %v222 = vld [vmem:[%s3 + $0x30] sm:$0xf]
  %v223 = vld [vmem:[%s3 + $0x34] sm:$0xf]
  %v224 = vld [vmem:[%s3 + $0x38] sm:$0xf]
  %v225 = vld [vmem:[%s3 + $0x3c] sm:$0xf]
  %v226 = vld [vmem:[#allocation3] sm:$0xff]
  %v227 = vld [vmem:[#allocation2] sm:$0xff]
  %v228 = vpack.c.bf16 %v227, %v227
  %v245 = vunpack.c.l.b16 %v210
  %v246 = vunpack.c.l.b16 %v211
  %v247 = vunpack.c.l.b16 %v212
  %v248 = vunpack.c.l.b16 %v213
  %v249 = vunpack.c.l.b16 %v214
  %v250 = vunpack.c.l.b16 %v215
  %v251 = vunpack.c.l.b16 %v216
  %v252 = vunpack.c.l.b16 %v217
  %v253 = vunpack.c.l.b16 %v218
  %v254 = vunpack.c.l.b16 %v219
  %v255 = vunpack.c.l.b16 %v220
  %v256 = vunpack.c.l.b16 %v221
  %v257 = vunpack.c.l.b16 %v222
  %v258 = vunpack.c.l.b16 %v223
  %v259 = vunpack.c.l.b16 %v224
  %v260 = vunpack.c.l.b16 %v225
  %v261 = vpack.c.b16 %v246, %v245
  %v262 = vpack.c.b16 %v248, %v247
  %v263 = vpack.c.b16 %v250, %v249
  %v264 = vpack.c.b16 %v252, %v251
  %v265 = vpack.c.b16 %v254, %v253
  %v266 = vpack.c.b16 %v256, %v255
  %v267 = vpack.c.b16 %v258, %v257
  %v268 = vpack.c.b16 %v260, %v259
  %277 = vmatprep.subr.bf16.mxu0 0
  %278 = vmatpush1.bf16.msra.mxu0 %v261
  %279 = vmatprep.subr.bf16.mxu0 0
  %280 = vmatpush1.bf16.msra.mxu0 %v262
  %281 = vmatprep.subr.bf16.mxu0 0
  %282 = vmatpush1.bf16.msra.mxu0 %v263
  %283 = vmatprep.subr.bf16.mxu0 0
  %284 = vmatpush1.bf16.msra.mxu0 %v264
  %285 = vmatprep.subr.bf16.mxu0 0
  %286 = vmatpush1.bf16.msra.mxu0 %v265
  %287 = vmatprep.subr.bf16.mxu0 0
  %288 = vmatpush1.bf16.msra.mxu0 %v266
  %289 = vmatprep.subr.bf16.mxu0 0
  %290 = vmatpush1.bf16.msra.mxu0 %v267
  %291 = vmatprep.subr.bf16.mxu0 0
  %292 = vmatpush1.bf16.msra.mxu0 %v268
  %293 = vmatprep.subr.bf16.mxu0 0
  %294 = vmatpush1.bf16.msra.mxu0 0
  %295 = vmatprep.subr.bf16.mxu0 0
  %296 = vmatpush1.bf16.msra.mxu0 0
  %297 = vmatprep.subr.bf16.mxu0 0
  %298 = vmatpush1.bf16.msra.mxu0 0
  %299 = vmatprep.subr.bf16.mxu0 0
  %300 = vmatpush1.bf16.msra.mxu0 0
  %301 = vmatprep.subr.bf16.mxu0 0
  %302 = vmatpush1.bf16.msra.mxu0 0
  %303 = vmatprep.subr.bf16.mxu0 0
  %304 = vmatpush1.bf16.msra.mxu0 0
  %305 = vmatprep.subr.bf16.mxu0 0
  %306 = vmatpush1.bf16.msra.mxu0 0
  %307 = vmatprep.subr.bf16.mxu0 0
  %308 = vmatpush1.bf16.msra.mxu0 0
  %309 = vmatprep.mubr.bf16.mxu0 0
  %310 = vmatmul.mubr.bf16.gmra.mrb[0].mxu0 %v228
  %v311 = vpop.f32.mrb[0].mxu0
  %v312 = vadd.f32 0.0, %v311
  %v313 = vpop.f32.mrb[0].mxu0
  %v314 = vpop.f32.mrb[0].mxu0
  %v315 = vpop.f32.mrb[0].mxu0
  %316 = vdwg.mxu0
  %v317 = vadd.f32 %v226, %v312
  %v318 = vtanh.pop %v317
  %319 = vst [vmem:[#allocation2] sm:$0xff] %v318
  %320 = vst [vmem:[#allocation4] sm:$0xff] %v318
  %s321 = scalar_lea.vmem [#allocation3], 8
  %v322 = vld [vmem:[%s321] sm:$0xff]
  %v323 = vld [vmem:[#allocation2] sm:$0xff]
  %v324 = vpack.c.bf16 %v323, %v323
  %325 = vmatprep.subr.bf16.mxu0 0
  %326 = vmatpush1.bf16.msra.mxu0 %v261
  %327 = vmatprep.subr.bf16.mxu0 0
  %328 = vmatpush1.bf16.msra.mxu0 %v262
  %329 = vmatprep.subr.bf16.mxu0 0
  %330 = vmatpush1.bf16.msra.mxu0 %v263
  %331 = vmatprep.subr.bf16.mxu0 0
  %332 = vmatpush1.bf16.msra.mxu0 %v264
  %333 = vmatprep.subr.bf16.mxu0 0
  %334 = vmatpush1.bf16.msra.mxu0 %v265
  %335 = vmatprep.subr.bf16.mxu0 0
  %336 = vmatpush1.bf16.msra.mxu0 %v266
  %337 = vmatprep.subr.bf16.mxu0 0
  %338 = vmatpush1.bf16.msra.mxu0 %v267
  %339 = vmatprep.subr.bf16.mxu0 0
  %340 = vmatpush1.bf16.msra.mxu0 %v268
  %341 = vmatprep.subr.bf16.mxu0 0
  %342 = vmatpush1.bf16.msra.mxu0 0
  %343 = vmatprep.subr.bf16.mxu0 0
  %344 = vmatpush1.bf16.msra.mxu0 0
  %345 = vmatprep.subr.bf16.mxu0 0
  %346 = vmatpush1.bf16.msra.mxu0 0
  %347 = vmatprep.subr.bf16.mxu0 0
  %348 = vmatpush1.bf16.msra.mxu0 0
  %349 = vmatprep.subr.bf16.mxu0 0
  %350 = vmatpush1.bf16.msra.mxu0 0
  %351 = vmatprep.subr.bf16.mxu0 0
  %352 = vmatpush1.bf16.msra.mxu0 0
  %353 = vmatprep.subr.bf16.mxu0 0
  %354 = vmatpush1.bf16.msra.mxu0 0
  %355 = vmatprep.subr.bf16.mxu0 0
  %356 = vmatpush1.bf16.msra.mxu0 0
  %357 = vmatprep.mubr.bf16.mxu0 0
  %358 = vmatmul.mubr.bf16.gmra.mrb[0].mxu0 %v324
  %v359 = vpop.f32.mrb[0].mxu0
  %v360 = vadd.f32 0.0, %v359
  %v361 = vpop.f32.mrb[0].mxu0
  %v362 = vpop.f32.mrb[0].mxu0
  %v363 = vpop.f32.mrb[0].mxu0
  %364 = vdwg.mxu0
  %v365 = vadd.f32 %v322, %v360
  %v366 = vtanh.pop %v365
  %367 = vst [vmem:[#allocation2] sm:$0xff] %v366
  %s368 = scalar_lea.vmem [#allocation4], 8
  %369 = vst [vmem:[%s368] sm:$0xff] %v366
  %s370 = scalar_lea.vmem [#allocation3], 16
  %v371 = vld [vmem:[%s370] sm:$0xff]
  %v372 = vld [vmem:[#allocation2] sm:$0xff]
  %v373 = vpack.c.bf16 %v372, %v372
  %374 = vmatprep.subr.bf16.mxu0 0
  %375 = vmatpush1.bf16.msra.mxu0 %v261
  %376 = vmatprep.subr.bf16.mxu0 0
  %377 = vmatpush1.bf16.msra.mxu0 %v262
  %378 = vmatprep.subr.bf16.mxu0 0
  %379 = vmatpush1.bf16.msra.mxu0 %v263
  %380 = vmatprep.subr.bf16.mxu0 0
  %381 = vmatpush1.bf16.msra.mxu0 %v264
  %382 = vmatprep.subr.bf16.mxu0 0
  %383 = vmatpush1.bf16.msra.mxu0 %v265
  %384 = vmatprep.subr.bf16.mxu0 0
  %385 = vmatpush1.bf16.msra.mxu0 %v266
  %386 = vmatprep.subr.bf16.mxu0 0
  %387 = vmatpush1.bf16.msra.mxu0 %v267
  %388 = vmatprep.subr.bf16.mxu0 0
  %389 = vmatpush1.bf16.msra.mxu0 %v268
  %390 = vmatprep.subr.bf16.mxu0 0
  %391 = vmatpush1.bf16.msra.mxu0 0
  %392 = vmatprep.subr.bf16.mxu0 0
  %393 = vmatpush1.bf16.msra.mxu0 0
  %394 = vmatprep.subr.bf16.mxu0 0
  %395 = vmatpush1.bf16.msra.mxu0 0
  %396 = vmatprep.subr.bf16.mxu0 0
  %397 = vmatpush1.bf16.msra.mxu0 0
  %398 = vmatprep.subr.bf16.mxu0 0
  %399 = vmatpush1.bf16.msra.mxu0 0
  %400 = vmatprep.subr.bf16.mxu0 0
  %401 = vmatpush1.bf16.msra.mxu0 0
  %402 = vmatprep.subr.bf16.mxu0 0
  %403 = vmatpush1.bf16.msra.mxu0 0
  %404 = vmatprep.subr.bf16.mxu0 0
  %405 = vmatpush1.bf16.msra.mxu0 0
  %406 = vmatprep.mubr.bf16.mxu0 0
  %407 = vmatmul.mubr.bf16.gmra.mrb[0].mxu0 %v373
  %v408 = vpop.f32.mrb[0].mxu0
  %v409 = vadd.f32 0.0, %v408
  %v410 = vpop.f32.mrb[0].mxu0
  %v411 = vpop.f32.mrb[0].mxu0
  %v412 = vpop.f32.mrb[0].mxu0
  %413 = vdwg.mxu0
  %v414 = vadd.f32 %v371, %v409
  %v415 = vtanh.pop %v414
  %416 = vst [vmem:[#allocation2] sm:$0xff] %v415
  %s417 = scalar_lea.vmem [#allocation4], 16
  %418 = vst [vmem:[%s417] sm:$0xff] %v415
  %s419 = scalar_lea.vmem [#allocation3], 24
  %v420 = vld [vmem:[%s419] sm:$0xff]
  %v421 = vld [vmem:[#allocation2] sm:$0xff]
  %v422 = vpack.c.bf16 %v421, %v421
  %423 = vmatprep.subr.bf16.mxu0 0
  %424 = vmatpush1.bf16.msra.mxu0 %v261
  %425 = vmatprep.subr.bf16.mxu0 0
  %426 = vmatpush1.bf16.msra.mxu0 %v262
  %427 = vmatprep.subr.bf16.mxu0 0
  %428 = vmatpush1.bf16.msra.mxu0 %v263
  %429 = vmatprep.subr.bf16.mxu0 0
  %430 = vmatpush1.bf16.msra.mxu0 %v264
  %431 = vmatprep.subr.bf16.mxu0 0
  %432 = vmatpush1.bf16.msra.mxu0 %v265
  %433 = vmatprep.subr.bf16.mxu0 0
  %434 = vmatpush1.bf16.msra.mxu0 %v266
  %435 = vmatprep.subr.bf16.mxu0 0
  %436 = vmatpush1.bf16.msra.mxu0 %v267
  %437 = vmatprep.subr.bf16.mxu0 0
  %438 = vmatpush1.bf16.msra.mxu0 %v268
  %439 = vmatprep.subr.bf16.mxu0 0
  %440 = vmatpush1.bf16.msra.mxu0 0
  %441 = vmatprep.subr.bf16.mxu0 0
  %442 = vmatpush1.bf16.msra.mxu0 0
  %443 = vmatprep.subr.bf16.mxu0 0
  %444 = vmatpush1.bf16.msra.mxu0 0
  %445 = vmatprep.subr.bf16.mxu0 0
  %446 = vmatpush1.bf16.msra.mxu0 0
  %447 = vmatprep.subr.bf16.mxu0 0
  %448 = vmatpush1.bf16.msra.mxu0 0
  %449 = vmatprep.subr.bf16.mxu0 0
  %450 = vmatpush1.bf16.msra.mxu0 0
  %451 = vmatprep.subr.bf16.mxu0 0
  %452 = vmatpush1.bf16.msra.mxu0 0
  %453 = vmatprep.subr.bf16.mxu0 0
  %454 = vmatpush1.bf16.msra.mxu0 0
  %455 = vmatprep.mubr.bf16.mxu0 0
  %456 = vmatmul.mubr.bf16.gmra.mrb[0].mxu0 %v422
  %v457 = vpop.f32.mrb[0].mxu0
  %v458 = vadd.f32 0.0, %v457
  %v459 = vpop.f32.mrb[0].mxu0
  %v460 = vpop.f32.mrb[0].mxu0
  %v461 = vpop.f32.mrb[0].mxu0
  %462 = vdwg.mxu0
  %v463 = vadd.f32 %v420, %v458
  %v464 = vtanh.pop %v463
  %465 = vst [vmem:[#allocation2] sm:$0xff] %v464
  %s466 = scalar_lea.vmem [#allocation4], 24
  %467 = vst [vmem:[%s466] sm:$0xff] %v464
  %s468 = scalar_lea.vmem [#allocation3], 32
  %v469 = vld [vmem:[%s468] sm:$0xff]
  %v470 = vld [vmem:[#allocation2] sm:$0xff]
  %v471 = vpack.c.bf16 %v470, %v470
  %472 = vmatprep.subr.bf16.mxu0 0
  %473 = vmatpush1.bf16.msra.mxu0 %v261
  %474 = vmatprep.subr.bf16.mxu0 0
  %475 = vmatpush1.bf16.msra.mxu0 %v262
  %476 = vmatprep.subr.bf16.mxu0 0
  %477 = vmatpush1.bf16.msra.mxu0 %v263
  %478 = vmatprep.subr.bf16.mxu0 0
  %479 = vmatpush1.bf16.msra.mxu0 %v264
  %480 = vmatprep.subr.bf16.mxu0 0
  %481 = vmatpush1.bf16.msra.mxu0 %v265
  %482 = vmatprep.subr.bf16.mxu0 0
  %483 = vmatpush1.bf16.msra.mxu0 %v266
  %484 = vmatprep.subr.bf16.mxu0 0
  %485 = vmatpush1.bf16.msra.mxu0 %v267
  %486 = vmatprep.subr.bf16.mxu0 0
  %487 = vmatpush1.bf16.msra.mxu0 %v268
  %488 = vmatprep.subr.bf16.mxu0 0
  %489 = vmatpush1.bf16.msra.mxu0 0
  %490 = vmatprep.subr.bf16.mxu0 0
  %491 = vmatpush1.bf16.msra.mxu0 0
  %492 = vmatprep.subr.bf16.mxu0 0
  %493 = vmatpush1.bf16.msra.mxu0 0
  %494 = vmatprep.subr.bf16.mxu0 0
  %495 = vmatpush1.bf16.msra.mxu0 0
  %496 = vmatprep.subr.bf16.mxu0 0
  %497 = vmatpush1.bf16.msra.mxu0 0
  %498 = vmatprep.subr.bf16.mxu0 0
  %499 = vmatpush1.bf16.msra.mxu0 0
  %500 = vmatprep.subr.bf16.mxu0 0
  %501 = vmatpush1.bf16.msra.mxu0 0
  %502 = vmatprep.subr.bf16.mxu0 0
  %503 = vmatpush1.bf16.msra.mxu0 0
  %504 = vmatprep.mubr.bf16.mxu0 0
  %505 = vmatmul.mubr.bf16.gmra.mrb[0].mxu0 %v471
  %v506 = vpop.f32.mrb[0].mxu0
  %v507 = vadd.f32 0.0, %v506
  %v508 = vpop.f32.mrb[0].mxu0
  %v509 = vpop.f32.mrb[0].mxu0
  %v510 = vpop.f32.mrb[0].mxu0
  %511 = vdwg.mxu0
  %v512 = vadd.f32 %v469, %v507
  %v513 = vtanh.pop %v512
  %514 = vst [vmem:[#allocation2] sm:$0xff] %v513
  %s515 = scalar_lea.vmem [#allocation4], 32
  %516 = vst [vmem:[%s515] sm:$0xff] %v513
  %s517 = scalar_lea.vmem [#allocation3], 40
  %v518 = vld [vmem:[%s517] sm:$0xff]
  %v519 = vld [vmem:[#allocation2] sm:$0xff]
  %v520 = vpack.c.bf16 %v519, %v519
  %521 = vmatprep.subr.bf16.mxu0 0
  %522 = vmatpush1.bf16.msra.mxu0 %v261
  %523 = vmatprep.subr.bf16.mxu0 0
  %524 = vmatpush1.bf16.msra.mxu0 %v262
  %525 = vmatprep.subr.bf16.mxu0 0
  %526 = vmatpush1.bf16.msra.mxu0 %v263
  %527 = vmatprep.subr.bf16.mxu0 0
  %528 = vmatpush1.bf16.msra.mxu0 %v264
  %529 = vmatprep.subr.bf16.mxu0 0
  %530 = vmatpush1.bf16.msra.mxu0 %v265
  %531 = vmatprep.subr.bf16.mxu0 0
  %532 = vmatpush1.bf16.msra.mxu0 %v266
  %533 = vmatprep.subr.bf16.mxu0 0
  %534 = vmatpush1.bf16.msra.mxu0 %v267
  %535 = vmatprep.subr.bf16.mxu0 0
  %536 = vmatpush1.bf16.msra.mxu0 %v268
  %537 = vmatprep.subr.bf16.mxu0 0
  %538 = vmatpush1.bf16.msra.mxu0 0
  %539 = vmatprep.subr.bf16.mxu0 0
  %540 = vmatpush1.bf16.msra.mxu0 0
  %541 = vmatprep.subr.bf16.mxu0 0
  %542 = vmatpush1.bf16.msra.mxu0 0
  %543 = vmatprep.subr.bf16.mxu0 0
  %544 = vmatpush1.bf16.msra.mxu0 0
  %545 = vmatprep.subr.bf16.mxu0 0
  %546 = vmatpush1.bf16.msra.mxu0 0
  %547 = vmatprep.subr.bf16.mxu0 0
  %548 = vmatpush1.bf16.msra.mxu0 0
  %549 = vmatprep.subr.bf16.mxu0 0
  %550 = vmatpush1.bf16.msra.mxu0 0
  %551 = vmatprep.subr.bf16.mxu0 0
  %552 = vmatpush1.bf16.msra.mxu0 0
  %553 = vmatprep.mubr.bf16.mxu0 0
  %554 = vmatmul.mubr.bf16.gmra.mrb[0].mxu0 %v520
  %v555 = vpop.f32.mrb[0].mxu0
  %v556 = vadd.f32 0.0, %v555
  %v557 = vpop.f32.mrb[0].mxu0
  %v558 = vpop.f32.mrb[0].mxu0
  %v559 = vpop.f32.mrb[0].mxu0
  %560 = vdwg.mxu0
  %v561 = vadd.f32 %v518, %v556
  %v562 = vtanh.pop %v561
  %563 = vst [vmem:[#allocation2] sm:$0xff] %v562
  %s564 = scalar_lea.vmem [#allocation4], 40
  %565 = vst [vmem:[%s564] sm:$0xff] %v562
  %s566 = scalar_lea.vmem [#allocation3], 48
  %v567 = vld [vmem:[%s566] sm:$0xff]
  %v568 = vld [vmem:[#allocation2] sm:$0xff]
  %v569 = vpack.c.bf16 %v568, %v568
  %570 = vmatprep.subr.bf16.mxu0 0
  %571 = vmatpush1.bf16.msra.mxu0 %v261
  %572 = vmatprep.subr.bf16.mxu0 0
  %573 = vmatpush1.bf16.msra.mxu0 %v262
  %574 = vmatprep.subr.bf16.mxu0 0
  %575 = vmatpush1.bf16.msra.mxu0 %v263
  %576 = vmatprep.subr.bf16.mxu0 0
  %577 = vmatpush1.bf16.msra.mxu0 %v264
  %578 = vmatprep.subr.bf16.mxu0 0
  %579 = vmatpush1.bf16.msra.mxu0 %v265
  %580 = vmatprep.subr.bf16.mxu0 0
  %581 = vmatpush1.bf16.msra.mxu0 %v266
  %582 = vmatprep.subr.bf16.mxu0 0
  %583 = vmatpush1.bf16.msra.mxu0 %v267
  %584 = vmatprep.subr.bf16.mxu0 0
  %585 = vmatpush1.bf16.msra.mxu0 %v268
  %586 = vmatprep.subr.bf16.mxu0 0
  %587 = vmatpush1.bf16.msra.mxu0 0
  %588 = vmatprep.subr.bf16.mxu0 0
  %589 = vmatpush1.bf16.msra.mxu0 0
  %590 = vmatprep.subr.bf16.mxu0 0
  %591 = vmatpush1.bf16.msra.mxu0 0
  %592 = vmatprep.subr.bf16.mxu0 0
  %593 = vmatpush1.bf16.msra.mxu0 0
  %594 = vmatprep.subr.bf16.mxu0 0
  %595 = vmatpush1.bf16.msra.mxu0 0
  %596 = vmatprep.subr.bf16.mxu0 0
  %597 = vmatpush1.bf16.msra.mxu0 0
  %598 = vmatprep.subr.bf16.mxu0 0
  %599 = vmatpush1.bf16.msra.mxu0 0
  %600 = vmatprep.subr.bf16.mxu0 0
  %601 = vmatpush1.bf16.msra.mxu0 0
  %602 = vmatprep.mubr.bf16.mxu0 0
  %603 = vmatmul.mubr.bf16.gmra.mrb[0].mxu0 %v569
  %v604 = vpop.f32.mrb[0].mxu0
  %v605 = vadd.f32 0.0, %v604
  %v606 = vpop.f32.mrb[0].mxu0
  %v607 = vpop.f32.mrb[0].mxu0
  %v608 = vpop.f32.mrb[0].mxu0
  %609 = vdwg.mxu0
  %v610 = vadd.f32 %v567, %v605
  %v611 = vtanh.pop %v610
  %612 = vst [vmem:[#allocation2] sm:$0xff] %v611
  %s613 = scalar_lea.vmem [#allocation4], 48
  %614 = vst [vmem:[%s613] sm:$0xff] %v611
  %s615 = scalar_lea.vmem [#allocation3], 56
  %v616 = vld [vmem:[%s615] sm:$0xff]
  %v617 = vld [vmem:[#allocation2] sm:$0xff]
  %v618 = vpack.c.bf16 %v617, %v617
  %619 = vmatprep.subr.bf16.mxu0 0
  %620 = vmatpush1.bf16.msra.mxu0 %v261
  %621 = vmatprep.subr.bf16.mxu0 0
  %622 = vmatpush1.bf16.msra.mxu0 %v262
  %623 = vmatprep.subr.bf16.mxu0 0
  %624 = vmatpush1.bf16.msra.mxu0 %v263
  %625 = vmatprep.subr.bf16.mxu0 0
  %626 = vmatpush1.bf16.msra.mxu0 %v264
  %627 = vmatprep.subr.bf16.mxu0 0
  %628 = vmatpush1.bf16.msra.mxu0 %v265
  %629 = vmatprep.subr.bf16.mxu0 0
  %630 = vmatpush1.bf16.msra.mxu0 %v266
  %631 = vmatprep.subr.bf16.mxu0 0
  %632 = vmatpush1.bf16.msra.mxu0 %v267
  %633 = vmatprep.subr.bf16.mxu0 0
  %634 = vmatpush1.bf16.msra.mxu0 %v268
  %635 = vmatprep.subr.bf16.mxu0 0
  %636 = vmatpush1.bf16.msra.mxu0 0
  %637 = vmatprep.subr.bf16.mxu0 0
  %638 = vmatpush1.bf16.msra.mxu0 0
  %639 = vmatprep.subr.bf16.mxu0 0
  %640 = vmatpush1.bf16.msra.mxu0 0
  %641 = vmatprep.subr.bf16.mxu0 0
  %642 = vmatpush1.bf16.msra.mxu0 0
  %643 = vmatprep.subr.bf16.mxu0 0
  %644 = vmatpush1.bf16.msra.mxu0 0
  %645 = vmatprep.subr.bf16.mxu0 0
  %646 = vmatpush1.bf16.msra.mxu0 0
  %647 = vmatprep.subr.bf16.mxu0 0
  %648 = vmatpush1.bf16.msra.mxu0 0
  %649 = vmatprep.subr.bf16.mxu0 0
  %650 = vmatpush1.bf16.msra.mxu0 0
  %651 = vmatprep.mubr.bf16.mxu0 0
  %652 = vmatmul.mubr.bf16.gmra.mrb[0].mxu0 %v618
  %v653 = vpop.f32.mrb[0].mxu0
  %v654 = vadd.f32 0.0, %v653
  %v655 = vpop.f32.mrb[0].mxu0
  %v656 = vpop.f32.mrb[0].mxu0
  %v657 = vpop.f32.mrb[0].mxu0
  %658 = vdwg.mxu0
  %v659 = vadd.f32 %v616, %v654
  %v660 = vtanh.pop %v659
  %661 = vst [vmem:[#allocation2] sm:$0xff] %v660
  %s662 = scalar_lea.vmem [#allocation4], 56
  %663 = vst [vmem:[%s662] sm:$0xff] %v660
  %v664 = vld [vmem:[%s1] sm:$0xff]
  %v665 = vld [vmem:[%s1 + $0x8] sm:$0xff]
  %v666 = vld [vmem:[%s1 + $0x10] sm:$0xff]
  %v667 = vld [vmem:[%s1 + $0x18] sm:$0xff]
  %v668 = vld [vmem:[%s1 + $0x20] sm:$0xff]
  %v669 = vld [vmem:[%s1 + $0x28] sm:$0xff]
  %v670 = vld [vmem:[%s1 + $0x30] sm:$0xff]
  %v671 = vld [vmem:[%s1 + $0x38] sm:$0xff]
  %v672 = vld [vmem:[#allocation4] sm:$0xff]
  %v673 = vld [vmem:[#allocation4 + $0x8] sm:$0xff]
  %v674 = vld [vmem:[#allocation4 + $0x10] sm:$0xff]
  %v675 = vld [vmem:[#allocation4 + $0x18] sm:$0xff]
  %v676 = vld [vmem:[#allocation4 + $0x20] sm:$0xff]
  %v677 = vld [vmem:[#allocation4 + $0x28] sm:$0xff]
  %v678 = vld [vmem:[#allocation4 + $0x30] sm:$0xff]
  %v679 = vld [vmem:[#allocation4 + $0x38] sm:$0xff]
  %681 = vset.pattern.permute.xlu0 0
  %682 = vperm.xlu0 %681, %v664
  %v683 = vpop.permute.xlu0 %682
  %686 = vset.pattern.permute.xlu0 0
  %687 = vperm.xlu0 %686, %v665
  %v688 = vpop.permute.xlu0 %687
  %691 = vset.pattern.permute.xlu0 0
  %692 = vperm.xlu0 %691, %v666
  %v693 = vpop.permute.xlu0 %692
  %696 = vset.pattern.permute.xlu0 0
  %697 = vperm.xlu0 %696, %v667
  %v698 = vpop.permute.xlu0 %697
  %701 = vset.pattern.permute.xlu0 0
  %702 = vperm.xlu0 %701, %v668
  %v703 = vpop.permute.xlu0 %702
  %706 = vset.pattern.permute.xlu0 0
  %707 = vperm.xlu0 %706, %v669
  %v708 = vpop.permute.xlu0 %707
  %711 = vset.pattern.permute.xlu0 0
  %712 = vperm.xlu0 %711, %v670
  %v713 = vpop.permute.xlu0 %712
  %716 = vset.pattern.permute.xlu0 0
  %717 = vperm.xlu0 %716, %v671
  %v718 = vpop.permute.xlu0 %717
  %v720 = vmul.f32 %v672, %v683
  %v721 = vmul.f32 %v673, %v688
  %v722 = vmul.f32 %v674, %v693
  %v723 = vmul.f32 %v675, %v698
  %v724 = vmul.f32 %v676, %v703
  %v725 = vmul.f32 %v677, %v708
  %v726 = vmul.f32 %v678, %v713
  %v727 = vmul.f32 %v679, %v718
  %728 = vst [vmem:[%s8] sm:$0xff] %v720
  %729 = vst [vmem:[%s8 + $0x8] sm:$0xff] %v721
  %730 = vst [vmem:[%s8 + $0x10] sm:$0xff] %v722
  %731 = vst [vmem:[%s8 + $0x18] sm:$0xff] %v723
  %732 = vst [vmem:[%s8 + $0x20] sm:$0xff] %v724
  %733 = vst [vmem:[%s8 + $0x28] sm:$0xff] %v725
  %734 = vst [vmem:[%s8 + $0x30] sm:$0xff] %v726
  %735 = vst [vmem:[%s8 + $0x38] sm:$0xff] %v727
  %v736 = vpack.c.bf16 %v673, %v672
  %v737 = vpack.c.bf16 %v675, %v674
  %v738 = vpack.c.bf16 %v677, %v676
  %v739 = vpack.c.bf16 %v679, %v678
  %v740 = vld [vmem:[%s5] sm:$0xf]
  %v741 = vld [vmem:[%s5 + $0x4] sm:$0xf]
  %v742 = vld [vmem:[%s5 + $0x8] sm:$0xf]
  %v743 = vld [vmem:[%s5 + $0xc] sm:$0xf]
  %v744 = vld [vmem:[%s5 + $0x10] sm:$0xf]
  %v745 = vld [vmem:[%s5 + $0x14] sm:$0xf]
  %v746 = vld [vmem:[%s5 + $0x18] sm:$0xf]
  %v747 = vld [vmem:[%s5 + $0x1c] sm:$0xf]
  %v748 = vld [vmem:[%s5 + $0x20] sm:$0xf]
  %v749 = vld [vmem:[%s5 + $0x24] sm:$0xf]
  %v750 = vld [vmem:[%s5 + $0x28] sm:$0xf]
  %v751 = vld [vmem:[%s5 + $0x2c] sm:$0xf]
  %v752 = vld [vmem:[%s5 + $0x30] sm:$0xf]
  %v753 = vld [vmem:[%s5 + $0x34] sm:$0xf]
  %v754 = vld [vmem:[%s5 + $0x38] sm:$0xf]
  %v755 = vld [vmem:[%s5 + $0x3c] sm:$0xf]
  %v756 = vld [vmem:[%s6] sm:$0x1]
  %v758 = vlaneseq
  %v759 = vshrl.u32 %v758, 7
  %v760 = vsub.s32 0, %v759
  %v761 = vrot.slane %v756, %v760
  %v779 = vunpack.c.l.b16 %v740
  %v780 = vunpack.c.l.b16 %v741
  %v781 = vunpack.c.l.b16 %v742
  %v782 = vunpack.c.l.b16 %v743
  %v783 = vunpack.c.l.b16 %v744
  %v784 = vunpack.c.l.b16 %v745
  %v785 = vunpack.c.l.b16 %v746
  %v786 = vunpack.c.l.b16 %v747
  %v787 = vunpack.c.l.b16 %v748
  %v788 = vunpack.c.l.b16 %v749
  %v789 = vunpack.c.l.b16 %v750
  %v790 = vunpack.c.l.b16 %v751
  %v791 = vunpack.c.l.b16 %v752
  %v792 = vunpack.c.l.b16 %v753
  %v793 = vunpack.c.l.b16 %v754
  %v794 = vunpack.c.l.b16 %v755
  %v795 = vpack.c.b16 %v780, %v779
  %v796 = vpack.c.b16 %v782, %v781
  %v797 = vpack.c.b16 %v784, %v783
  %v798 = vpack.c.b16 %v786, %v785
  %v799 = vpack.c.b16 %v788, %v787
  %v800 = vpack.c.b16 %v790, %v789
  %v801 = vpack.c.b16 %v792, %v791
  %v802 = vpack.c.b16 %v794, %v793
  %811 = vmatprep.subr.bf16.mxu0 0
  %812 = vmatpush1.bf16.msra.mxu0 %v795
  %813 = vmatprep.subr.bf16.mxu0 0
  %814 = vmatpush1.bf16.msra.mxu0 %v796
  %815 = vmatprep.subr.bf16.mxu0 0
  %816 = vmatpush1.bf16.msra.mxu0 %v797
  %817 = vmatprep.subr.bf16.mxu0 0
  %818 = vmatpush1.bf16.msra.mxu0 %v798
  %819 = vmatprep.subr.bf16.mxu0 0
  %820 = vmatpush1.bf16.msra.mxu0 %v799
  %821 = vmatprep.subr.bf16.mxu0 0
  %822 = vmatpush1.bf16.msra.mxu0 %v800
  %823 = vmatprep.subr.bf16.mxu0 0
  %824 = vmatpush1.bf16.msra.mxu0 %v801
  %825 = vmatprep.subr.bf16.mxu0 0
  %826 = vmatpush1.bf16.msra.mxu0 %v802
  %827 = vmatprep.subr.bf16.mxu0 0
  %828 = vmatpush1.bf16.msra.mxu0 0
  %829 = vmatprep.subr.bf16.mxu0 0
  %830 = vmatpush1.bf16.msra.mxu0 0
  %831 = vmatprep.subr.bf16.mxu0 0
  %832 = vmatpush1.bf16.msra.mxu0 0
  %833 = vmatprep.subr.bf16.mxu0 0
  %834 = vmatpush1.bf16.msra.mxu0 0
  %835 = vmatprep.subr.bf16.mxu0 0
  %836 = vmatpush1.bf16.msra.mxu0 0
  %837 = vmatprep.subr.bf16.mxu0 0
  %838 = vmatpush1.bf16.msra.mxu0 0
  %839 = vmatprep.subr.bf16.mxu0 0
  %840 = vmatpush1.bf16.msra.mxu0 0
  %841 = vmatprep.subr.bf16.mxu0 0
  %842 = vmatpush1.bf16.msra.mxu0 0
  %843 = vmatprep.mubr.bf16.mxu0 0
  %844 = vmatmul.mubr.bf16.gmra.mrb[0].mxu0 %v736
  %v845 = vpop.f32.mrb[0].mxu0
  %v846 = vadd.f32 %v761, %v845
  %v847 = vpop.f32.mrb[0].mxu0
  %v848 = vpop.f32.mrb[0].mxu0
  %v849 = vadd.f32 %v761, %v848
  %v850 = vpop.f32.mrb[0].mxu0
  %851 = vmatprep.mubr.bf16.mxu0 0
  %852 = vmatmul.mubr.bf16.gmra.mrb[0].mxu0 %v737
  %v853 = vpop.f32.mrb[0].mxu0
  %v854 = vadd.f32 %v761, %v853
  %v855 = vpop.f32.mrb[0].mxu0
  %v856 = vpop.f32.mrb[0].mxu0
  %v857 = vadd.f32 %v761, %v856
  %v858 = vpop.f32.mrb[0].mxu0
  %859 = vmatprep.mubr.bf16.mxu0 0
  %860 = vmatmul.mubr.bf16.gmra.mrb[0].mxu0 %v738
  %v861 = vpop.f32.mrb[0].mxu0
  %v862 = vadd.f32 %v761, %v861
  %v863 = vpop.f32.mrb[0].mxu0
  %v864 = vpop.f32.mrb[0].mxu0
  %v865 = vadd.f32 %v761, %v864
  %v866 = vpop.f32.mrb[0].mxu0
  %867 = vmatprep.mubr.bf16.mxu0 0
  %868 = vmatmul.mubr.bf16.gmra.mrb[0].mxu0 %v739
  %v869 = vpop.f32.mrb[0].mxu0
  %v870 = vadd.f32 %v761, %v869
  %v871 = vpop.f32.mrb[0].mxu0
  %v872 = vpop.f32.mrb[0].mxu0
  %v873 = vadd.f32 %v761, %v872
  %v874 = vpop.f32.mrb[0].mxu0
  %875 = vdwg.mxu0
  %v876 = vmul.f32 %v846, %v683
  %v877 = vmul.f32 %v849, %v688
  %v878 = vmul.f32 %v854, %v693
  %v879 = vmul.f32 %v857, %v698
  %v880 = vmul.f32 %v862, %v703
  %v881 = vmul.f32 %v865, %v708
  %v882 = vmul.f32 %v870, %v713
  %v883 = vmul.f32 %v873, %v718
  %884 = vst [vmem:[%s7] sm:$0xff] %v876
  %885 = vst [vmem:[%s7 + $0x8] sm:$0xff] %v877
  %886 = vst [vmem:[%s7 + $0x10] sm:$0xff] %v878
  %887 = vst [vmem:[%s7 + $0x18] sm:$0xff] %v879
  %888 = vst [vmem:[%s7 + $0x20] sm:$0xff] %v880
  %889 = vst [vmem:[%s7 + $0x28] sm:$0xff] %v881
  %890 = vst [vmem:[%s7 + $0x30] sm:$0xff] %v882
  %891 = vst [vmem:[%s7 + $0x38] sm:$0xff] %v883
  // Predicated region
  $region34: #{transducer_decoder_forward.1} parent=0 // pred_check
    _
  $region35: #{transducer_decoder_forward.1} parent=0 // pred_check_branch
    %893 = sbr.rel (0) target = $region37
  $region36: #{transducer_decoder_forward.1} parent=0 // pred_region
    _
  $region37: #{transducer_decoder_forward.1} parent=0 // pred_fallthru
    _
  // Predicated region
  $region38: #{transducer_decoder_forward.1} parent=0 // pred_check
    _
  $region39: #{transducer_decoder_forward.1} parent=0 // pred_check_branch
    %895 = sbr.rel (0) target = $region41
  $region40: #{transducer_decoder_forward.1} parent=0 // pred_region
    _
  $region41: #{transducer_decoder_forward.1} parent=0 // pred_fallthru
    _
  // Predicated region
  $region42: #{transducer_decoder_forward.1} parent=0 // pred_check
    _
  $region43: #{transducer_decoder_forward.1} parent=0 // pred_check_branch
    %897 = sbr.rel (0) target = $region45
  $region44: #{transducer_decoder_forward.1} parent=0 // pred_region
    _
  $region45: #{transducer_decoder_forward.1} parent=0 // pred_fallthru
    _
  // Predicated region
  $region46: #{transducer_decoder_forward.1} parent=0 // pred_check
    _
  $region47: #{transducer_decoder_forward.1} parent=0 // pred_check_branch
    %899 = sbr.rel (0) target = $region49
  $region48: #{transducer_decoder_forward.1} parent=0 // pred_region
    _
  $region49: #{transducer_decoder_forward.1} parent=0 // pred_fallthru
    _

</llo_original>
